<compile_context>
chip_gen: v7x
topology: tpu7x:2x2x1
jax: 0.10.0
libtpu: 0.0.40
codegen_flags: <defaults>
</compile_context>

<pallas_src>
import jax
import jax.numpy as jnp
from jax.experimental import pallas as pl
from jax.experimental.pallas import tpu as pltpu


def _affine_kernel(factor_ref, offset_ref, x_ref, o_ref):
    # factor/offset live in SMEM as (1,) float32 scalars.  Compute in f32
    # (type promotion) and round once at the final store.
    f = factor_ref[0]
    b = offset_ref[0]
    o_ref[...] = (x_ref[...] * f + b).astype(o_ref.dtype)


_LANE = 128
_WIDTH_CANDIDATES = (4096, 2048, 1024, 512, 256, 128)
_TARGET_BLOCK_BYTES = 4 * 1024 * 1024          # aligned 2-D path (~4 MiB / block)
_RAGGED_TARGET_BYTES = 256 * 1024              # ragged (1, n) path (data bytes / block)


def _round_up(a, b):
    return ((a + b - 1) // b) * b


def _compiler_params(block_vmem_bytes):
    # in + out, double buffered = 4 buffers; add headroom, clamp to a range
    # that is safe on all generations (v5e scoped default 16 MiB, v7x 64 MiB
    # physical VMEM).
    vmem_limit = 4 * block_vmem_bytes + 4 * 1024 * 1024
    vmem_limit = max(16 * 1024 * 1024, min(vmem_limit, 48 * 1024 * 1024))
    return pltpu.CompilerParams(
        dimension_semantics=("parallel",),
        vmem_limit_bytes=int(vmem_limit),
    )


def _cost_estimate(n_elems, itemsize):
    # 1 mul + 1 add per element; pure streaming: read n + write n.
    return pl.CostEstimate(
        flops=2 * n_elems,
        transcendentals=0,
        bytes_accessed=2 * n_elems * itemsize,
    )


def single_manifold_forward(x, factor, offset):
    """out = x * factor + offset, computed in a Pallas TPU kernel."""
    orig_shape = x.shape
    dtype = x.dtype
    n = x.size
    if n == 0:
        return x

    itemsize = jnp.dtype(dtype).itemsize
    pack = max(8, 32 // itemsize)              # sublane pack: 8 f32, 16 bf16, 32 int8

    factor_arr = jnp.asarray(factor, dtype=jnp.float32).reshape(1)
    offset_arr = jnp.asarray(offset, dtype=jnp.float32).reshape(1)

    flat = x.reshape(-1)                        # metadata-only for contiguous input

    if n % _LANE == 0:
        # ---- Aligned path: wide lane-dense 2-D slab, zero padding. ----
        width = next(w for w in _WIDTH_CANDIDATES if n >= w and n % w == 0)
        x2d = flat.reshape(-1, width)
        M = x2d.shape[0]

        rows_target = max(pack, _TARGET_BLOCK_BYTES // (itemsize * width))
        if rows_target >= M:
            if M >= 2 * pack:
                # Split so grid >= 2: feeds both TensorCores on v7x and
                # enables DMA/compute pipelining (neutral on v5e/v6e).
                block_rows = _round_up(pl.cdiv(M, 2), pack)
            else:
                block_rows = M                  # full extent (tiny tensor)
        else:
            block_rows = (rows_target // pack) * pack

        grid = (pl.cdiv(M, block_rows),)
        block_shape = (block_rows, width)
        index_map = lambda i: (i, 0)
        out_struct = jax.ShapeDtypeStruct((M, width), dtype)
    else:
        # ---- Ragged path: (1, n) view, boundary block is masked. ----
        # No jnp.pad of the whole input and no output slice -> 1 read + 1 write.
        x2d = flat.reshape(1, n)
        w_target = max(_LANE, ((_RAGGED_TARGET_BYTES // itemsize) // _LANE) * _LANE)
        if n <= w_target:
            block_shape = (1, n)                # full extent, exact
            grid = (1,)
        else:
            block_shape = (1, w_target)         # last block padded/masked by Pallas
            grid = (pl.cdiv(n, w_target),)
        index_map = lambda i: (0, i)
        out_struct = jax.ShapeDtypeStruct((1, n), dtype)

    # Conservative per-block VMEM footprint (rows padded to 8 sublanes).
    block_vmem_bytes = _round_up(block_shape[0], 8) * block_shape[1] * itemsize

    out2d = pl.pallas_call(
        _affine_kernel,
        out_shape=out_struct,
        grid_spec=pltpu.PrefetchScalarGridSpec(
            num_scalar_prefetch=0,
            grid=grid,
            in_specs=[
                pl.BlockSpec(memory_space=pltpu.SMEM),   # factor scalar
                pl.BlockSpec(memory_space=pltpu.SMEM),   # offset scalar
                pl.BlockSpec(block_shape, index_map),
            ],
            out_specs=pl.BlockSpec(block_shape, index_map),
        ),
        compiler_params=_compiler_params(block_vmem_bytes),
        cost_estimate=_cost_estimate(n, itemsize),
    )(factor_arr, offset_arr, x2d)

    return out2d.reshape(orig_shape)


class SingleManifoldJAX:
    """Deterministic JAX/Pallas re-implementation of SingleManifold (forward only)."""

    def __init__(self, factor_init=1.0, offset_init=0.0):
        # Matches PyTorch: factor = factor_init * factor_init, etc.
        self.factor = jnp.float32(factor_init * factor_init)
        self.offset = jnp.float32(offset_init * offset_init)

    def __call__(self, x):
        self.x = x
        self.out = single_manifold_forward(x, self.factor, self.offset)
        self.save_dict = dict(inp=self.x, out=self.out)
        return self.out


if __name__ == "__main__":
    key = jax.random.PRNGKey(0)

    # Small NCHW input consistent with the module's generic elementwise forward.
    x = jax.random.normal(key, (2, 4, 16, 16), dtype=jnp.float32)

    model = SingleManifoldJAX(factor_init=1.5, offset_init=0.5)
    out = jax.block_until_ready(model(x))

    ref = x * model.factor + model.offset
    assert out.shape == x.shape and out.dtype == x.dtype
    assert jnp.allclose(out, ref, atol=1e-6, rtol=1e-6)

    # Ragged shape: no pad / no slice, boundary handled inside the kernel.
    x_odd = jax.random.normal(jax.random.PRNGKey(1), (3, 5, 7), dtype=jnp.float32)
    out_odd = jax.block_until_ready(
        single_manifold_forward(x_odd, model.factor, model.offset))
    assert out_odd.shape == x_odd.shape
    assert jnp.allclose(out_odd, x_odd * model.factor + model.offset,
                        atol=1e-6, rtol=1e-6)

    # Medium aligned tensor: exercises the grid >= 2 (multi-block) path.
    x_mid = jax.random.normal(jax.random.PRNGKey(2), (4, 16, 32, 32), dtype=jnp.float32)
    out_mid = jax.block_until_ready(
        single_manifold_forward(x_mid, model.factor, model.offset))
    assert jnp.allclose(out_mid, x_mid * model.factor + model.offset,
                        atol=1e-6, rtol=1e-6)

    # bf16 path: f32 intermediate, single rounding at the store.
    x_bf16 = x.astype(jnp.bfloat16)
    out_bf16 = jax.block_until_ready(
        single_manifold_forward(x_bf16, model.factor, model.offset))
    ref_bf16 = (x_bf16.astype(jnp.float32) * model.factor + model.offset
                ).astype(jnp.bfloat16)
    assert out_bf16.dtype == jnp.bfloat16
    assert jnp.allclose(out_bf16.astype(jnp.float32), ref_bf16.astype(jnp.float32),
                        atol=1e-2, rtol=1e-2)

    print("KERNEL_OK")
</pallas_src>

<mosaic_0001>
module attributes {stable_mosaic.version = 11 : i64} {
  func.func @_affine_kernel(%arg0: i32, %arg1: memref<1xf32, #tpu.memory_space<smem>>, %arg2: memref<1xf32, #tpu.memory_space<smem>>, %arg3: memref<1x2048xf32, #tpu.memory_space<vmem>>, %arg4: memref<1x2048xf32, #tpu.memory_space<vmem>>) attributes {dimension_semantics = [#tpu.dimension_semantics<parallel>], iteration_bounds = array<i64: 1>, scalar_prefetch = 0 : i64, scratch_operands = 0 : i64, tpu.core_type = #tpu.core_type<tc>, window_params = [{transform_indices = @transform_0, window_bounds = array<i64: 1>}, {transform_indices = @transform_1, window_bounds = array<i64: 1>}, {transform_indices = @transform_2, window_bounds = array<i64: 1, 2048>}, {transform_indices = @transform_3, window_bounds = array<i64: 1, 2048>}]} {
    %c0 = arith.constant 0 : index
    %0 = memref.load %arg1[%c0] : memref<1xf32, #tpu.memory_space<smem>>
    %c0_0 = arith.constant 0 : index
    %1 = memref.load %arg2[%c0_0] : memref<1xf32, #tpu.memory_space<smem>>
    %c0_1 = arith.constant 0 : index
    %c0_2 = arith.constant 0 : index
    %2 = vector.load %arg3[%c0_1, %c0_2] : memref<1x2048xf32, #tpu.memory_space<vmem>>, vector<1x2048xf32>
    %3 = vector.broadcast %0 : f32 to vector<1x2048xf32>
    %4 = arith.mulf %2, %3 : vector<1x2048xf32>
    %5 = vector.broadcast %1 : f32 to vector<1x2048xf32>
    %6 = arith.addf %4, %5 : vector<1x2048xf32>
    %c0_3 = arith.constant 0 : index
    %c0_4 = arith.constant 0 : index
    %7 = vector.load %arg4[%c0_3, %c0_4] : memref<1x2048xf32, #tpu.memory_space<vmem>>, vector<1x2048xf32>
    tpu.vector_store %arg4[%c0_3, %c0_4], %6 {strides = array<i32>} : memref<1x2048xf32, #tpu.memory_space<vmem>>, vector<1x2048xf32>,
    return
  }
  func.func @transform_0(%arg0: i32) -> i32 {
    %c0_i32 = arith.constant 0 : i32
    %c0_i32_0 = arith.constant 0 : i32
    return %c0_i32 : i32
  }
  func.func @transform_1(%arg0: i32) -> i32 {
    %c0_i32 = arith.constant 0 : i32
    %c0_i32_0 = arith.constant 0 : i32
    return %c0_i32 : i32
  }
  func.func @transform_2(%arg0: i32) -> (i32, i32) {
    %c0_i32 = arith.constant 0 : i32
    %c0_i32_0 = arith.constant 0 : i32
    return %arg0, %c0_i32 : i32, i32
  }
  func.func @transform_3(%arg0: i32) -> (i32, i32) {
    %c0_i32 = arith.constant 0 : i32
    %c0_i32_0 = arith.constant 0 : i32
    return %arg0, %c0_i32 : i32, i32
  }
}

</mosaic_0001>

<llo_original>
// kernel: tpu_custom_call.1
$region0: #{tpu_custom_call.1}
  #allocation0 [shape = 'u32[]', space=smem, size = 0x4, offset = 0x4, fixed_abs, tag = 'smem constant byte address 0x4 - core index']
  #allocation1 [shape = 'u32[144,128]{1,0:T(1,128)}', space=vmem, size = 0x12000, scoped, tag = 'internal scratch']
  #allocation2 [shape = 'f32[1]{0:T(128)S(6)}', space=smem, size = 0x200, scoped, tag = 'scoped memory for tpu_custom_call.1']
  #allocation3 [shape = 'f32[1]{0:T(128)S(6)}', space=smem, size = 0x200, scoped, tag = 'scoped memory for tpu_custom_call.1']
  %s0 = inlined_call_operand.<no memory space> [shape: f32[1], index: 0, kind: input, shape index: {}]
  %s1 = inlined_call_operand.<no memory space> [shape: f32[1], index: 1, kind: input, shape index: {}]
  %s2 = inlined_call_operand.hbm [shape: f32[1,2048], index: 2, kind: input, shape index: {}]
  %s3 = inlined_call_operand.hbm [shape: f32[1,2048], index: 3, kind: output, shape index: {}]
  %s4 = sld [smem:[#allocation0]]
  $region26: #{tpu_custom_call.1} parent=0
    _
  %s6 = ssub.s32 1, %s4
  %s7 = scalar_select 0, %s6, %s4
  %8 = sst [smem:[#allocation2]] %s0
  %9 = sst [smem:[#allocation3]] %s1
  $region1: #{tpu_custom_call.1} parent=0
    #allocation4 [shape = 'u8[8192]{0}', space=vmem, size = 0x2000, scoped, tag = 'input window, operand 2, single buffered']
    #allocation5 [shape = 's32[1]{0}', space=sflag, size = 0x4, scoped, tag = 'scoped memory for tpu_custom_call.1']
    #allocation6 [shape = 's32[1]{0}', space=sflag, size = 0x4, scoped, tag = 'scoped memory for tpu_custom_call.1']
    #allocation7 [shape = 'u8[8192]{0}', space=vmem, size = 0x2000, scoped, tag = 'output window, operand 0, single buffered']
    %10 = vsyncpa [#allocation5], 0
    %11 = vsyncpa [#allocation6], 0
    // Predicated region
    $region2: #{tpu_custom_call.1} parent=1 // pred_check
      _
    $region3: #{tpu_custom_call.1} parent=1 // pred_check_branch
      %13 = sbr.rel (0) target = $region5
    $region4: #{tpu_custom_call.1} parent=1 // pred_region
      _
    $region5: #{tpu_custom_call.1} parent=1 // pred_fallthru
      _
    // Predicated region
    $region6: #{tpu_custom_call.1} parent=1 // pred_check
      _
    $region7: #{tpu_custom_call.1} parent=1 // pred_check_branch
      %15 = sbr.rel (0) target = $region9
    $region8: #{tpu_custom_call.1} parent=1 // pred_region
      _
    $region9: #{tpu_custom_call.1} parent=1 // pred_fallthru
      _
    // Predicated region
    $region10: #{tpu_custom_call.1} parent=1 // pred_check
      _
    $region11: #{tpu_custom_call.1} parent=1 // pred_check_branch
      %17 = sbr.rel (0) target = $region13
    $region12: #{tpu_custom_call.1} parent=1 // pred_region
      %s19 = ssub.s32 256, 256
      %20 = vsyncadd [#allocation5], %s19
      %s22 = sshll.u32 [#allocation4], 4
      %s23 = int_to_ptr.vmem [resolvable:$true] %s22
      %25 = dma.hbm_to_vmem [thread:$0]  %s2, 256, %s23, [#allocation5]
    $region13: #{tpu_custom_call.1} parent=1 // pred_fallthru
      _
    // Predicated region
    $region14: #{tpu_custom_call.1} parent=1 // pred_check
      _
    $region15: #{tpu_custom_call.1} parent=1 // pred_check_branch
      %27 = sbr.rel (0) target = $region17
    $region16: #{tpu_custom_call.1} parent=1 // pred_region
      %28 = dma.done [#allocation5], 256
    $region17: #{tpu_custom_call.1} parent=1 // pred_fallthru
      _
    %s29 = sld [smem:[#allocation2]]
    %s30 = sld [smem:[#allocation3]]
    %v31 = vld [vmem:[#allocation4] sm:$0xff]
    %v32 = vld [vmem:[#allocation4 + $0x8] sm:$0xff]
    %v33 = vstv %s29
    %v34 = vmul.f32 %v31, %v33
    %v35 = vmul.f32 %v32, %v33
    %v36 = vstv %s30
    %v37 = vadd.f32 %v34, %v36
    %v38 = vadd.f32 %v35, %v36
    %39 = vst [vmem:[#allocation7] sm:$0xff] %v37
    %40 = vst [vmem:[#allocation7 + $0x8] sm:$0xff] %v38
    // Predicated region
    $region18: #{tpu_custom_call.1} parent=1 // pred_check
      _
    $region19: #{tpu_custom_call.1} parent=1 // pred_check_branch
      %42 = sbr.rel (0) target = $region21
    $region20: #{tpu_custom_call.1} parent=1 // pred_region
      %s44 = ssub.s32 256, 256
      %45 = vsyncadd [#allocation6], %s44
      %s47 = sshll.u32 [#allocation7], 4
      %s48 = int_to_ptr.vmem [resolvable:$true] %s47
      %50 = dma.vmem_to_hbm [thread:$0]  %s48, 256, %s3, [#allocation6]
    $region21: #{tpu_custom_call.1} parent=1 // pred_fallthru
      _
    // Predicated region
    $region22: #{tpu_custom_call.1} parent=1 // pred_check
      _
    $region23: #{tpu_custom_call.1} parent=1 // pred_check_branch
      %52 = sbr.rel (0) target = $region25
    $region24: #{tpu_custom_call.1} parent=1 // pred_region
      %53 = dma.done [#allocation6], 256
    $region25: #{tpu_custom_call.1} parent=1 // pred_fallthru
      _
    %54 = vsyncpa [#allocation5], 1
    %55 = vsyncpa [#allocation6], 1

</llo_original>
